<compile_context>
chip_gen: v7x
topology: tpu7x:2x2x1
jax: 0.10.0
libtpu: 0.0.40
codegen_flags: <defaults>
</compile_context>

<pallas_src>
import jax
import jax.numpy as jnp
from jax.experimental import pallas as pl
from jax.experimental.pallas import tpu as pltpu


def _round_up(a, b):
    return (a + b - 1) // b * b


def _cdiv(a, b):
    return (a + b - 1) // b


# --------------------------------------------------------------------------
# Kernels
# --------------------------------------------------------------------------

def _linear_fused_kernel(x_ref, w_ref, b_ref, aux_ref):
    # x_ref:   (tm, Kp)  activations in their original dtype (cast in-kernel)
    # w_ref:   (Kp, tn)  shared Linear weight (VMEM-resident: index_map ignores m)
    # b_ref:   (1,  tn)  f32 shared Linear bias
    # aux_ref: (tm, tn)  per-view features ("aux")
    x = x_ref[...].astype(w_ref.dtype)          # bf16 cast on VPU, hidden under MXU
    acc = jnp.dot(x, w_ref[...], preferred_element_type=jnp.float32)
    aux_ref[...] = (acc + b_ref[...]).astype(aux_ref.dtype)


def _linear_streamk_f32_kernel(x_ref, w_ref, b_ref, aux_ref):
    # f32 output: accumulate directly into the (k-resident) output block.
    k = pl.program_id(2)

    @pl.when(k == 0)
    def _():
        aux_ref[...] = jnp.zeros_like(aux_ref)

    aux_ref[...] += jnp.dot(x_ref[...].astype(w_ref.dtype), w_ref[...],
                            preferred_element_type=jnp.float32)

    @pl.when(k == pl.num_programs(2) - 1)
    def _():
        aux_ref[...] += b_ref[...]


def _linear_streamk_scratch_kernel(x_ref, w_ref, b_ref, aux_ref, acc_ref):
    # Narrow output dtype: keep an f32 accumulator scratch across the K axis.
    k = pl.program_id(2)

    @pl.when(k == 0)
    def _():
        acc_ref[...] = jnp.zeros_like(acc_ref)

    acc_ref[...] += jnp.dot(x_ref[...].astype(w_ref.dtype), w_ref[...],
                            preferred_element_type=jnp.float32)

    @pl.when(k == pl.num_programs(2) - 1)
    def _():
        aux_ref[...] = (acc_ref[...] + b_ref[...]).astype(aux_ref.dtype)


# --------------------------------------------------------------------------
# Wrapper
# --------------------------------------------------------------------------

def _vmem_limit_bytes(requested):
    """Generation-aware VMEM cap (leave >=16 MiB for Mosaic internal scratch)."""
    try:
        physical = pltpu.get_tpu_info().vmem_capacity_bytes
    except Exception:
        physical = 64 << 20            # conservative: assume v7x-sized VMEM
    cap = max(physical - (16 << 20), 16 << 20)
    return int(min(max(requested, 16 << 20), cap))


def view_avg_aggregate(mvimages, weight, bias, *,
                       tm_max=512, tn_max=512, tk_max=1024,
                       cast_to_bf16=True):
    """Returns (pooled_view.squeeze(), aux) exactly like ViewAvgAggregate.forward."""
    B, V, C, D, H, W = mvimages.shape
    K = C * D * H * W
    F = weight.shape[1]
    M = B * V
    out_dtype = mvimages.dtype
    mm_dtype = jnp.bfloat16 if cast_to_bf16 else jnp.float32

    x_bytes = jnp.dtype(mvimages.dtype).itemsize
    w_bytes = jnp.dtype(mm_dtype).itemsize
    out_bytes = jnp.dtype(out_dtype).itemsize

    # ---- M tiling: prefer >=2 m tiles so v7x's second TensorCore gets work.
    tm = min(tm_max, _round_up(M, 8))
    if (_round_up(M, tm) // tm) < 2 and M > 8:
        tm = _round_up(_cdiv(M, 2), 8)
    Mp = _round_up(M, tm)

    # ---- F tiling: bound per-block VMEM for large-F backbones (lane-dense).
    Fp0 = _round_up(F, 128)
    tn = min(tn_max, Fp0)
    Fp = _round_up(Fp0, tn)

    # ---- K handling: keep the weight VMEM-resident (single K block) whenever
    # its block and the widened activation block fit comfortably; else stream K.
    Kp0 = _round_up(K, 128)
    fused_k = (Kp0 * tn * w_bytes <= (8 << 20)) and (tm * Kp0 * x_bytes <= (8 << 20))

    if fused_k:
        Kp = Kp0
        grid = (Mp // tm, Fp // tn)
        in_specs = [
            pl.BlockSpec((tm, Kp), lambda m, n: (m, 0)),   # activations (orig dtype)
            pl.BlockSpec((Kp, tn), lambda m, n: (0, n)),   # weight, VMEM-resident
            pl.BlockSpec((1, tn), lambda m, n: (0, n)),    # bias
        ]
        out_specs = pl.BlockSpec((tm, tn), lambda m, n: (m, n))
        scratch_shapes = []
        kernel = _linear_fused_kernel
        dim_sem = ("parallel", "parallel")
        vmem_req = (2 * tm * Kp * x_bytes + 2 * Kp * tn * w_bytes
                    + 2 * tm * tn * out_bytes + 2 * 8 * tn * 4 + (2 << 20))
    else:
        tk = min(tk_max, Kp0)
        Kp = _round_up(Kp0, tk)
        grid = (Mp // tm, Fp // tn, Kp // tk)
        in_specs = [
            pl.BlockSpec((tm, tk), lambda m, n, k: (m, k)),
            pl.BlockSpec((tk, tn), lambda m, n, k: (k, n)),
            pl.BlockSpec((1, tn), lambda m, n, k: (0, n)),
        ]
        out_specs = pl.BlockSpec((tm, tn), lambda m, n, k: (m, n))
        if jnp.dtype(out_dtype) == jnp.float32:
            scratch_shapes = []
            kernel = _linear_streamk_f32_kernel
            acc_bytes = 0
        else:
            scratch_shapes = [pltpu.VMEM((tm, tn), jnp.float32)]
            kernel = _linear_streamk_scratch_kernel
            acc_bytes = tm * tn * 4
        dim_sem = ("parallel", "parallel", "arbitrary")
        vmem_req = (2 * tm * tk * x_bytes + 2 * tk * tn * w_bytes
                    + 2 * tm * tn * out_bytes + 2 * 8 * tn * 4 + acc_bytes
                    + (2 << 20))

    # Glue: batch_tensor + Flatten.  Activations stay in their original dtype
    # (cast happens in-kernel); padding is only materialized if actually needed.
    x = mvimages.reshape(M, K)
    if (Mp, Kp) != (M, K):
        x = jnp.pad(x, ((0, Mp - M), (0, Kp - K)))
    w = weight.astype(mm_dtype)
    if (Kp, Fp) != (K, F):
        w = jnp.pad(w, ((0, Kp - K), (0, Fp - F)))
    b2 = bias.reshape(1, F).astype(jnp.float32)
    if Fp != F:
        b2 = jnp.pad(b2, ((0, 0), (0, Fp - F)))

    aux_full = pl.pallas_call(
        kernel,
        out_shape=jax.ShapeDtypeStruct((Mp, Fp), out_dtype),
        grid_spec=pltpu.PrefetchScalarGridSpec(
            num_scalar_prefetch=0,
            grid=grid,
            in_specs=in_specs,
            out_specs=out_specs,
            scratch_shapes=scratch_shapes,
        ),
        compiler_params=pltpu.CompilerParams(
            dimension_semantics=dim_sem,
            vmem_limit_bytes=_vmem_limit_bytes(vmem_req),
        ),
    )(x, w, b2)

    # lifting_net is the default identity nn.Sequential().
    aux = aux_full[:M, :F].reshape(B, V, F)
    # torch.mean(aux, dim=1).squeeze() -- mean accumulated in f32 for precision.
    pooled_view = jnp.squeeze(
        jnp.mean(aux.astype(jnp.float32), axis=1).astype(out_dtype))
    return pooled_view, aux


if __name__ == "__main__":
    # Small, module-consistent shapes.
    B, V, C, D, H, W = 2, 4, 4, 4, 8, 8
    K = C * D * H * W          # 1024
    F = 128                    # synthetic backbone output feature dim

    key = jax.random.PRNGKey(0)
    kx, kw, kb = jax.random.split(key, 3)
    mvimages = jax.random.normal(kx, (B, V, C, D, H, W), dtype=jnp.float32)
    # Deterministic synthetic "model" params: Linear(K -> F)
    weight = jax.random.normal(kw, (K, F), dtype=jnp.float32) * (1.0 / jnp.sqrt(K))
    bias = jax.random.normal(kb, (F,), dtype=jnp.float32) * 0.01

    pooled_view, aux = jax.jit(view_avg_aggregate)(mvimages, weight, bias)
    jax.block_until_ready((pooled_view, aux))

    # Reference matching the kernel's numerics (bf16 operands, f32 accumulate).
    x2 = mvimages.reshape(B * V, K)
    aux_ref_bf = (
        jnp.dot(x2.astype(jnp.bfloat16), weight.astype(jnp.bfloat16),
                preferred_element_type=jnp.float32) + bias
    ).reshape(B, V, F)
    pooled_ref_bf = jnp.squeeze(jnp.mean(aux_ref_bf, axis=1))

    # Pure-f32 module reference (loose tolerance accounts for bf16 operands).
    aux_ref_f32 = (x2 @ weight + bias).reshape(B, V, F)

    assert aux.shape == (B, V, F)
    assert pooled_view.shape == pooled_ref_bf.shape
    assert jnp.allclose(aux, aux_ref_bf, atol=1e-4, rtol=1e-4)
    assert jnp.allclose(pooled_view, pooled_ref_bf, atol=1e-4, rtol=1e-4)
    assert jnp.allclose(aux, aux_ref_f32, atol=5e-2, rtol=5e-2)

    print("KERNEL_OK")
</pallas_src>

<mosaic_0001>
module attributes {stable_mosaic.version = 11 : i64} {
  func.func @_linear_fused_kernel(%arg0: i32, %arg1: i32, %arg2: memref<8x1024xf32, #tpu.memory_space<vmem>>, %arg3: memref<1024x128xbf16, #tpu.memory_space<vmem>>, %arg4: memref<1x128xf32, #tpu.memory_space<vmem>>, %arg5: memref<8x128xf32, #tpu.memory_space<vmem>>) attributes {dimension_semantics = [#tpu.dimension_semantics<parallel>, #tpu.dimension_semantics<parallel>], iteration_bounds = array<i64: 1, 1>, scalar_prefetch = 0 : i64, scratch_operands = 0 : i64, tpu.core_type = #tpu.core_type<tc>, window_params = [{transform_indices = @transform_0, window_bounds = array<i64: 8, 1024>}, {transform_indices = @transform_1, window_bounds = array<i64: 1024, 128>}, {transform_indices = @transform_2, window_bounds = array<i64: 1, 128>}, {transform_indices = @transform_3, window_bounds = array<i64: 8, 128>}]} {
    %c0 = arith.constant 0 : index
    %c0_0 = arith.constant 0 : index
    %0 = vector.load %arg2[%c0, %c0_0] : memref<8x1024xf32, #tpu.memory_space<vmem>>, vector<8x1024xf32>
    %1 = arith.truncf %0 : vector<8x1024xf32> to vector<8x1024xbf16>
    %c0_1 = arith.constant 0 : index
    %c0_2 = arith.constant 0 : index
    %2 = vector.load %arg3[%c0_1, %c0_2] : memref<1024x128xbf16, #tpu.memory_space<vmem>>, vector<1024x128xbf16>
    %cst = arith.constant dense<0.000000e+00> : vector<8x128xf32>
    %3 = tpu.matmul %1, %2, %cst {dimension_numbers = #tpu.dot_dimension_numbers<[1], [0], [0], [1], [0, 0, 1, 1], [], []>} : vector<8x1024xbf16>, vector<1024x128xbf16>, vector<8x128xf32> -> vector<8x128xf32>
    %c0_3 = arith.constant 0 : index
    %c0_4 = arith.constant 0 : index
    %4 = vector.load %arg4[%c0_3, %c0_4] : memref<1x128xf32, #tpu.memory_space<vmem>>, vector<1x128xf32>
    %5 = vector.broadcast %4 : vector<1x128xf32> to vector<8x128xf32>
    %6 = arith.addf %3, %5 : vector<8x128xf32>
    %c0_5 = arith.constant 0 : index
    %c0_6 = arith.constant 0 : index
    %7 = vector.load %arg5[%c0_5, %c0_6] : memref<8x128xf32, #tpu.memory_space<vmem>>, vector<8x128xf32>
    tpu.vector_store %arg5[%c0_5, %c0_6], %6 {strides = array<i32>} : memref<8x128xf32, #tpu.memory_space<vmem>>, vector<8x128xf32>,
    return
  }
  func.func @transform_0(%arg0: i32, %arg1: i32) -> (i32, i32) {
    %c0_i32 = arith.constant 0 : i32
    %c0_i32_0 = arith.constant 0 : i32
    return %arg0, %c0_i32 : i32, i32
  }
  func.func @transform_1(%arg0: i32, %arg1: i32) -> (i32, i32) {
    %c0_i32 = arith.constant 0 : i32
    %c0_i32_0 = arith.constant 0 : i32
    return %c0_i32, %arg1 : i32, i32
  }
  func.func @transform_2(%arg0: i32, %arg1: i32) -> (i32, i32) {
    %c0_i32 = arith.constant 0 : i32
    %c0_i32_0 = arith.constant 0 : i32
    return %c0_i32, %arg1 : i32, i32
  }
  func.func @transform_3(%arg0: i32, %arg1: i32) -> (i32, i32) {
    %c0_i32 = arith.constant 0 : i32
    return %arg0, %arg1 : i32, i32
  }
}

</mosaic_0001>

<llo_original>
// kernel: view_avg_aggregate.1
$region0: #{view_avg_aggregate.1}
  #allocation0 [shape = 'u32[]', space=smem, size = 0x4, offset = 0x4, fixed_abs, tag = 'smem constant byte address 0x4 - core index']
  #allocation1 [shape = 'u32[144,128]{1,0:T(1,128)}', space=vmem, size = 0x12000, scoped, tag = 'internal scratch']
  %s0 = inlined_call_operand.vmem [shape: f32[8,1024], index: 0, kind: input, shape index: {}]
  %s1 = inlined_call_operand.vmem [shape: bf16[1024,128], index: 1, kind: input, shape index: {}]
  %s2 = inlined_call_operand.vmem [shape: f32[1,128], index: 2, kind: input, shape index: {}]
  %s3 = inlined_call_operand.vmem [shape: f32[8,128], index: 3, kind: output, shape index: {}]
  %s4 = sld [smem:[#allocation0]]
  $region22: #{view_avg_aggregate.1} parent=0
    _
  %s6 = ssub.s32 1, %s4
  %s7 = scalar_select 0, %s6, %s4
  // Predicated region
  $region2: #{view_avg_aggregate.1} parent=0 // pred_check
    _
  $region3: #{view_avg_aggregate.1} parent=0 // pred_check_branch
    %9 = sbr.rel (0) target = $region5
  $region4: #{view_avg_aggregate.1} parent=0 // pred_region
    _
  $region5: #{view_avg_aggregate.1} parent=0 // pred_fallthru
    _
  // Predicated region
  $region6: #{view_avg_aggregate.1} parent=0 // pred_check
    _
  $region7: #{view_avg_aggregate.1} parent=0 // pred_check_branch
    %11 = sbr.rel (0) target = $region9
  $region8: #{view_avg_aggregate.1} parent=0 // pred_region
    _
  $region9: #{view_avg_aggregate.1} parent=0 // pred_fallthru
    _
  // Predicated region
  $region10: #{view_avg_aggregate.1} parent=0 // pred_check
    _
  $region11: #{view_avg_aggregate.1} parent=0 // pred_check_branch
    %13 = sbr.rel (0) target = $region13
  $region12: #{view_avg_aggregate.1} parent=0 // pred_region
    _
  $region13: #{view_avg_aggregate.1} parent=0 // pred_fallthru
    _
  %v15 = vld [vmem:[%s0] sm:$0xff]
  %v16 = vld [vmem:[%s0 + $0x8] sm:$0xff]
  %v17 = vld [vmem:[%s0 + $0x10] sm:$0xff]
  %v18 = vld [vmem:[%s0 + $0x18] sm:$0xff]
  %v19 = vld [vmem:[%s0 + $0x20] sm:$0xff]
  %v20 = vld [vmem:[%s0 + $0x28] sm:$0xff]
  %v21 = vld [vmem:[%s0 + $0x30] sm:$0xff]
  %v22 = vld [vmem:[%s0 + $0x38] sm:$0xff]
  %v23 = vpack.c.bf16 %v15, %v15
  %v24 = vpack.c.bf16 %v16, %v16
  %v25 = vpack.c.bf16 %v17, %v17
  %v26 = vpack.c.bf16 %v18, %v18
  %v27 = vpack.c.bf16 %v19, %v19
  %v28 = vpack.c.bf16 %v20, %v20
  %v29 = vpack.c.bf16 %v21, %v21
  %v30 = vpack.c.bf16 %v22, %v22
  %v31 = vld [vmem:[%s1] sm:$0xf]
  %v32 = vld [vmem:[%s1 + $0x4] sm:$0xf]
  %v33 = vld [vmem:[%s1 + $0x8] sm:$0xf]
  %v34 = vld [vmem:[%s1 + $0xc] sm:$0xf]
  %v35 = vld [vmem:[%s1 + $0x10] sm:$0xf]
  %v36 = vld [vmem:[%s1 + $0x14] sm:$0xf]
  %v37 = vld [vmem:[%s1 + $0x18] sm:$0xf]
  %v38 = vld [vmem:[%s1 + $0x1c] sm:$0xf]
  %v39 = vld [vmem:[%s1 + $0x20] sm:$0xf]
  %v40 = vld [vmem:[%s1 + $0x24] sm:$0xf]
  %v41 = vld [vmem:[%s1 + $0x28] sm:$0xf]
  %v42 = vld [vmem:[%s1 + $0x2c] sm:$0xf]
  %v43 = vld [vmem:[%s1 + $0x30] sm:$0xf]
  %v44 = vld [vmem:[%s1 + $0x34] sm:$0xf]
  %v45 = vld [vmem:[%s1 + $0x38] sm:$0xf]
  %v46 = vld [vmem:[%s1 + $0x3c] sm:$0xf]
  %v47 = vld [vmem:[%s1 + $0x40] sm:$0xf]
  %v48 = vld [vmem:[%s1 + $0x44] sm:$0xf]
  %v49 = vld [vmem:[%s1 + $0x48] sm:$0xf]
  %v50 = vld [vmem:[%s1 + $0x4c] sm:$0xf]
  %v51 = vld [vmem:[%s1 + $0x50] sm:$0xf]
  %v52 = vld [vmem:[%s1 + $0x54] sm:$0xf]
  %v53 = vld [vmem:[%s1 + $0x58] sm:$0xf]
  %v54 = vld [vmem:[%s1 + $0x5c] sm:$0xf]
  %v55 = vld [vmem:[%s1 + $0x60] sm:$0xf]
  %v56 = vld [vmem:[%s1 + $0x64] sm:$0xf]
  %v57 = vld [vmem:[%s1 + $0x68] sm:$0xf]
  %v58 = vld [vmem:[%s1 + $0x6c] sm:$0xf]
  %v59 = vld [vmem:[%s1 + $0x70] sm:$0xf]
  %v60 = vld [vmem:[%s1 + $0x74] sm:$0xf]
  %v61 = vld [vmem:[%s1 + $0x78] sm:$0xf]
  %v62 = vld [vmem:[%s1 + $0x7c] sm:$0xf]
  %v63 = vld [vmem:[%s1 + $0x80] sm:$0xf]
  %v64 = vld [vmem:[%s1 + $0x84] sm:$0xf]
  %v65 = vld [vmem:[%s1 + $0x88] sm:$0xf]
  %v66 = vld [vmem:[%s1 + $0x8c] sm:$0xf]
  %v67 = vld [vmem:[%s1 + $0x90] sm:$0xf]
  %v68 = vld [vmem:[%s1 + $0x94] sm:$0xf]
  %v69 = vld [vmem:[%s1 + $0x98] sm:$0xf]
  %v70 = vld [vmem:[%s1 + $0x9c] sm:$0xf]
  %v71 = vld [vmem:[%s1 + $0xa0] sm:$0xf]
  %v72 = vld [vmem:[%s1 + $0xa4] sm:$0xf]
  %v73 = vld [vmem:[%s1 + $0xa8] sm:$0xf]
  %v74 = vld [vmem:[%s1 + $0xac] sm:$0xf]
  %v75 = vld [vmem:[%s1 + $0xb0] sm:$0xf]
  %v76 = vld [vmem:[%s1 + $0xb4] sm:$0xf]
  %v77 = vld [vmem:[%s1 + $0xb8] sm:$0xf]
  %v78 = vld [vmem:[%s1 + $0xbc] sm:$0xf]
  %v79 = vld [vmem:[%s1 + $0xc0] sm:$0xf]
  %v80 = vld [vmem:[%s1 + $0xc4] sm:$0xf]
  %v81 = vld [vmem:[%s1 + $0xc8] sm:$0xf]
  %v82 = vld [vmem:[%s1 + $0xcc] sm:$0xf]
  %v83 = vld [vmem:[%s1 + $0xd0] sm:$0xf]
  %v84 = vld [vmem:[%s1 + $0xd4] sm:$0xf]
  %v85 = vld [vmem:[%s1 + $0xd8] sm:$0xf]
  %v86 = vld [vmem:[%s1 + $0xdc] sm:$0xf]
  %v87 = vld [vmem:[%s1 + $0xe0] sm:$0xf]
  %v88 = vld [vmem:[%s1 + $0xe4] sm:$0xf]
  %v89 = vld [vmem:[%s1 + $0xe8] sm:$0xf]
  %v90 = vld [vmem:[%s1 + $0xec] sm:$0xf]
  %v91 = vld [vmem:[%s1 + $0xf0] sm:$0xf]
  %v92 = vld [vmem:[%s1 + $0xf4] sm:$0xf]
  %v93 = vld [vmem:[%s1 + $0xf8] sm:$0xf]
  %v94 = vld [vmem:[%s1 + $0xfc] sm:$0xf]
  %v95 = vld [vmem:[%s1 + $0x100] sm:$0xf]
  %v96 = vld [vmem:[%s1 + $0x104] sm:$0xf]
  %v97 = vld [vmem:[%s1 + $0x108] sm:$0xf]
  %v98 = vld [vmem:[%s1 + $0x10c] sm:$0xf]
  %v99 = vld [vmem:[%s1 + $0x110] sm:$0xf]
  %v100 = vld [vmem:[%s1 + $0x114] sm:$0xf]
  %v101 = vld [vmem:[%s1 + $0x118] sm:$0xf]
  %v102 = vld [vmem:[%s1 + $0x11c] sm:$0xf]
  %v103 = vld [vmem:[%s1 + $0x120] sm:$0xf]
  %v104 = vld [vmem:[%s1 + $0x124] sm:$0xf]
  %v105 = vld [vmem:[%s1 + $0x128] sm:$0xf]
  %v106 = vld [vmem:[%s1 + $0x12c] sm:$0xf]
  %v107 = vld [vmem:[%s1 + $0x130] sm:$0xf]
  %v108 = vld [vmem:[%s1 + $0x134] sm:$0xf]
  %v109 = vld [vmem:[%s1 + $0x138] sm:$0xf]
  %v110 = vld [vmem:[%s1 + $0x13c] sm:$0xf]
  %v111 = vld [vmem:[%s1 + $0x140] sm:$0xf]
  %v112 = vld [vmem:[%s1 + $0x144] sm:$0xf]
  %v113 = vld [vmem:[%s1 + $0x148] sm:$0xf]
  %v114 = vld [vmem:[%s1 + $0x14c] sm:$0xf]
  %v115 = vld [vmem:[%s1 + $0x150] sm:$0xf]
  %v116 = vld [vmem:[%s1 + $0x154] sm:$0xf]
  %v117 = vld [vmem:[%s1 + $0x158] sm:$0xf]
  %v118 = vld [vmem:[%s1 + $0x15c] sm:$0xf]
  %v119 = vld [vmem:[%s1 + $0x160] sm:$0xf]
  %v120 = vld [vmem:[%s1 + $0x164] sm:$0xf]
  %v121 = vld [vmem:[%s1 + $0x168] sm:$0xf]
  %v122 = vld [vmem:[%s1 + $0x16c] sm:$0xf]
  %v123 = vld [vmem:[%s1 + $0x170] sm:$0xf]
  %v124 = vld [vmem:[%s1 + $0x174] sm:$0xf]
  %v125 = vld [vmem:[%s1 + $0x178] sm:$0xf]
  %v126 = vld [vmem:[%s1 + $0x17c] sm:$0xf]
  %v127 = vld [vmem:[%s1 + $0x180] sm:$0xf]
  %v128 = vld [vmem:[%s1 + $0x184] sm:$0xf]
  %v129 = vld [vmem:[%s1 + $0x188] sm:$0xf]
  %v130 = vld [vmem:[%s1 + $0x18c] sm:$0xf]
  %v131 = vld [vmem:[%s1 + $0x190] sm:$0xf]
  %v132 = vld [vmem:[%s1 + $0x194] sm:$0xf]
  %v133 = vld [vmem:[%s1 + $0x198] sm:$0xf]
  %v134 = vld [vmem:[%s1 + $0x19c] sm:$0xf]
  %v135 = vld [vmem:[%s1 + $0x1a0] sm:$0xf]
  %v136 = vld [vmem:[%s1 + $0x1a4] sm:$0xf]
  %v137 = vld [vmem:[%s1 + $0x1a8] sm:$0xf]
  %v138 = vld [vmem:[%s1 + $0x1ac] sm:$0xf]
  %v139 = vld [vmem:[%s1 + $0x1b0] sm:$0xf]
  %v140 = vld [vmem:[%s1 + $0x1b4] sm:$0xf]
  %v141 = vld [vmem:[%s1 + $0x1b8] sm:$0xf]
  %v142 = vld [vmem:[%s1 + $0x1bc] sm:$0xf]
  %v143 = vld [vmem:[%s1 + $0x1c0] sm:$0xf]
  %v144 = vld [vmem:[%s1 + $0x1c4] sm:$0xf]
  %v145 = vld [vmem:[%s1 + $0x1c8] sm:$0xf]
  %v146 = vld [vmem:[%s1 + $0x1cc] sm:$0xf]
  %v147 = vld [vmem:[%s1 + $0x1d0] sm:$0xf]
  %v148 = vld [vmem:[%s1 + $0x1d4] sm:$0xf]
  %v149 = vld [vmem:[%s1 + $0x1d8] sm:$0xf]
  %v150 = vld [vmem:[%s1 + $0x1dc] sm:$0xf]
  %v151 = vld [vmem:[%s1 + $0x1e0] sm:$0xf]
  %v152 = vld [vmem:[%s1 + $0x1e4] sm:$0xf]
  %v153 = vld [vmem:[%s1 + $0x1e8] sm:$0xf]
  %v154 = vld [vmem:[%s1 + $0x1ec] sm:$0xf]
  %v155 = vld [vmem:[%s1 + $0x1f0] sm:$0xf]
  %v156 = vld [vmem:[%s1 + $0x1f4] sm:$0xf]
  %v157 = vld [vmem:[%s1 + $0x1f8] sm:$0xf]
  %v158 = vld [vmem:[%s1 + $0x1fc] sm:$0xf]
  %v159 = vld [vmem:[%s2] sm:$0x1]
  %v161 = vlaneseq
  %v162 = vshrl.u32 %v161, 7
  %v163 = vsub.s32 0, %v162
  %v164 = vrot.slane %v159, %v163
  %v294 = vunpack.c.l.b16 %v31
  %v295 = vunpack.c.l.b16 %v32
  %v296 = vunpack.c.l.b16 %v33
  %v297 = vunpack.c.l.b16 %v34
  %v298 = vunpack.c.l.b16 %v35
  %v299 = vunpack.c.l.b16 %v36
  %v300 = vunpack.c.l.b16 %v37
  %v301 = vunpack.c.l.b16 %v38
  %v302 = vunpack.c.l.b16 %v39
  %v303 = vunpack.c.l.b16 %v40
  %v304 = vunpack.c.l.b16 %v41
  %v305 = vunpack.c.l.b16 %v42
  %v306 = vunpack.c.l.b16 %v43
  %v307 = vunpack.c.l.b16 %v44
  %v308 = vunpack.c.l.b16 %v45
  %v309 = vunpack.c.l.b16 %v46
  %v310 = vunpack.c.l.b16 %v47
  %v311 = vunpack.c.l.b16 %v48
  %v312 = vunpack.c.l.b16 %v49
  %v313 = vunpack.c.l.b16 %v50
  %v314 = vunpack.c.l.b16 %v51
  %v315 = vunpack.c.l.b16 %v52
  %v316 = vunpack.c.l.b16 %v53
  %v317 = vunpack.c.l.b16 %v54
  %v318 = vunpack.c.l.b16 %v55
  %v319 = vunpack.c.l.b16 %v56
  %v320 = vunpack.c.l.b16 %v57
  %v321 = vunpack.c.l.b16 %v58
  %v322 = vunpack.c.l.b16 %v59
  %v323 = vunpack.c.l.b16 %v60
  %v324 = vunpack.c.l.b16 %v61
  %v325 = vunpack.c.l.b16 %v62
  %v326 = vunpack.c.l.b16 %v63
  %v327 = vunpack.c.l.b16 %v64
  %v328 = vunpack.c.l.b16 %v65
  %v329 = vunpack.c.l.b16 %v66
  %v330 = vunpack.c.l.b16 %v67
  %v331 = vunpack.c.l.b16 %v68
  %v332 = vunpack.c.l.b16 %v69
  %v333 = vunpack.c.l.b16 %v70
  %v334 = vunpack.c.l.b16 %v71
  %v335 = vunpack.c.l.b16 %v72
  %v336 = vunpack.c.l.b16 %v73
  %v337 = vunpack.c.l.b16 %v74
  %v338 = vunpack.c.l.b16 %v75
  %v339 = vunpack.c.l.b16 %v76
  %v340 = vunpack.c.l.b16 %v77
  %v341 = vunpack.c.l.b16 %v78
  %v342 = vunpack.c.l.b16 %v79
  %v343 = vunpack.c.l.b16 %v80
  %v344 = vunpack.c.l.b16 %v81
  %v345 = vunpack.c.l.b16 %v82
  %v346 = vunpack.c.l.b16 %v83
  %v347 = vunpack.c.l.b16 %v84
  %v348 = vunpack.c.l.b16 %v85
  %v349 = vunpack.c.l.b16 %v86
  %v350 = vunpack.c.l.b16 %v87
  %v351 = vunpack.c.l.b16 %v88
  %v352 = vunpack.c.l.b16 %v89
  %v353 = vunpack.c.l.b16 %v90
  %v354 = vunpack.c.l.b16 %v91
  %v355 = vunpack.c.l.b16 %v92
  %v356 = vunpack.c.l.b16 %v93
  %v357 = vunpack.c.l.b16 %v94
  %v358 = vunpack.c.l.b16 %v95
  %v359 = vunpack.c.l.b16 %v96
  %v360 = vunpack.c.l.b16 %v97
  %v361 = vunpack.c.l.b16 %v98
  %v362 = vunpack.c.l.b16 %v99
  %v363 = vunpack.c.l.b16 %v100
  %v364 = vunpack.c.l.b16 %v101
  %v365 = vunpack.c.l.b16 %v102
  %v366 = vunpack.c.l.b16 %v103
  %v367 = vunpack.c.l.b16 %v104
  %v368 = vunpack.c.l.b16 %v105
  %v369 = vunpack.c.l.b16 %v106
  %v370 = vunpack.c.l.b16 %v107
  %v371 = vunpack.c.l.b16 %v108
  %v372 = vunpack.c.l.b16 %v109
  %v373 = vunpack.c.l.b16 %v110
  %v374 = vunpack.c.l.b16 %v111
  %v375 = vunpack.c.l.b16 %v112
  %v376 = vunpack.c.l.b16 %v113
  %v377 = vunpack.c.l.b16 %v114
  %v378 = vunpack.c.l.b16 %v115
  %v379 = vunpack.c.l.b16 %v116
  %v380 = vunpack.c.l.b16 %v117
  %v381 = vunpack.c.l.b16 %v118
  %v382 = vunpack.c.l.b16 %v119
  %v383 = vunpack.c.l.b16 %v120
  %v384 = vunpack.c.l.b16 %v121
  %v385 = vunpack.c.l.b16 %v122
  %v386 = vunpack.c.l.b16 %v123
  %v387 = vunpack.c.l.b16 %v124
  %v388 = vunpack.c.l.b16 %v125
  %v389 = vunpack.c.l.b16 %v126
  %v390 = vunpack.c.l.b16 %v127
  %v391 = vunpack.c.l.b16 %v128
  %v392 = vunpack.c.l.b16 %v129
  %v393 = vunpack.c.l.b16 %v130
  %v394 = vunpack.c.l.b16 %v131
  %v395 = vunpack.c.l.b16 %v132
  %v396 = vunpack.c.l.b16 %v133
  %v397 = vunpack.c.l.b16 %v134
  %v398 = vunpack.c.l.b16 %v135
  %v399 = vunpack.c.l.b16 %v136
  %v400 = vunpack.c.l.b16 %v137
  %v401 = vunpack.c.l.b16 %v138
  %v402 = vunpack.c.l.b16 %v139
  %v403 = vunpack.c.l.b16 %v140
  %v404 = vunpack.c.l.b16 %v141
  %v405 = vunpack.c.l.b16 %v142
  %v406 = vunpack.c.l.b16 %v143
  %v407 = vunpack.c.l.b16 %v144
  %v408 = vunpack.c.l.b16 %v145
  %v409 = vunpack.c.l.b16 %v146
  %v410 = vunpack.c.l.b16 %v147
  %v411 = vunpack.c.l.b16 %v148
  %v412 = vunpack.c.l.b16 %v149
  %v413 = vunpack.c.l.b16 %v150
  %v414 = vunpack.c.l.b16 %v151
  %v415 = vunpack.c.l.b16 %v152
  %v416 = vunpack.c.l.b16 %v153
  %v417 = vunpack.c.l.b16 %v154
  %v418 = vunpack.c.l.b16 %v155
  %v419 = vunpack.c.l.b16 %v156
  %v420 = vunpack.c.l.b16 %v157
  %v421 = vunpack.c.l.b16 %v158
  %v422 = vpack.c.b16 %v295, %v294
  %v423 = vpack.c.b16 %v297, %v296
  %v424 = vpack.c.b16 %v299, %v298
  %v425 = vpack.c.b16 %v301, %v300
  %v426 = vpack.c.b16 %v303, %v302
  %v427 = vpack.c.b16 %v305, %v304
  %v428 = vpack.c.b16 %v307, %v306
  %v429 = vpack.c.b16 %v309, %v308
  %v430 = vpack.c.b16 %v311, %v310
  %v431 = vpack.c.b16 %v313, %v312
  %v432 = vpack.c.b16 %v315, %v314
  %v433 = vpack.c.b16 %v317, %v316
  %v434 = vpack.c.b16 %v319, %v318
  %v435 = vpack.c.b16 %v321, %v320
  %v436 = vpack.c.b16 %v323, %v322
  %v437 = vpack.c.b16 %v325, %v324
  %v438 = vpack.c.b16 %v327, %v326
  %v439 = vpack.c.b16 %v329, %v328
  %v440 = vpack.c.b16 %v331, %v330
  %v441 = vpack.c.b16 %v333, %v332
  %v442 = vpack.c.b16 %v335, %v334
  %v443 = vpack.c.b16 %v337, %v336
  %v444 = vpack.c.b16 %v339, %v338
  %v445 = vpack.c.b16 %v341, %v340
  %v446 = vpack.c.b16 %v343, %v342
  %v447 = vpack.c.b16 %v345, %v344
  %v448 = vpack.c.b16 %v347, %v346
  %v449 = vpack.c.b16 %v349, %v348
  %v450 = vpack.c.b16 %v351, %v350
  %v451 = vpack.c.b16 %v353, %v352
  %v452 = vpack.c.b16 %v355, %v354
  %v453 = vpack.c.b16 %v357, %v356
  %v454 = vpack.c.b16 %v359, %v358
  %v455 = vpack.c.b16 %v361, %v360
  %v456 = vpack.c.b16 %v363, %v362
  %v457 = vpack.c.b16 %v365, %v364
  %v458 = vpack.c.b16 %v367, %v366
  %v459 = vpack.c.b16 %v369, %v368
  %v460 = vpack.c.b16 %v371, %v370
  %v461 = vpack.c.b16 %v373, %v372
  %v462 = vpack.c.b16 %v375, %v374
  %v463 = vpack.c.b16 %v377, %v376
  %v464 = vpack.c.b16 %v379, %v378
  %v465 = vpack.c.b16 %v381, %v380
  %v466 = vpack.c.b16 %v383, %v382
  %v467 = vpack.c.b16 %v385, %v384
  %v468 = vpack.c.b16 %v387, %v386
  %v469 = vpack.c.b16 %v389, %v388
  %v470 = vpack.c.b16 %v391, %v390
  %v471 = vpack.c.b16 %v393, %v392
  %v472 = vpack.c.b16 %v395, %v394
  %v473 = vpack.c.b16 %v397, %v396
  %v474 = vpack.c.b16 %v399, %v398
  %v475 = vpack.c.b16 %v401, %v400
  %v476 = vpack.c.b16 %v403, %v402
  %v477 = vpack.c.b16 %v405, %v404
  %v478 = vpack.c.b16 %v407, %v406
  %v479 = vpack.c.b16 %v409, %v408
  %v480 = vpack.c.b16 %v411, %v410
  %v481 = vpack.c.b16 %v413, %v412
  %v482 = vpack.c.b16 %v415, %v414
  %v483 = vpack.c.b16 %v417, %v416
  %v484 = vpack.c.b16 %v419, %v418
  %v485 = vpack.c.b16 %v421, %v420
  %550 = vmatprep.subr.bf16.mxu0 0
  %551 = vmatpush1.bf16.msra.mxu0 %v422
  %552 = vmatprep.subr.bf16.mxu0 0
  %553 = vmatpush1.bf16.msra.mxu0 %v423
  %554 = vmatprep.subr.bf16.mxu0 0
  %555 = vmatpush1.bf16.msra.mxu0 %v424
  %556 = vmatprep.subr.bf16.mxu0 0
  %557 = vmatpush1.bf16.msra.mxu0 %v425
  %558 = vmatprep.subr.bf16.mxu0 0
  %559 = vmatpush1.bf16.msra.mxu0 %v426
  %560 = vmatprep.subr.bf16.mxu0 0
  %561 = vmatpush1.bf16.msra.mxu0 %v427
  %562 = vmatprep.subr.bf16.mxu0 0
  %563 = vmatpush1.bf16.msra.mxu0 %v428
  %564 = vmatprep.subr.bf16.mxu0 0
  %565 = vmatpush1.bf16.msra.mxu0 %v429
  %566 = vmatprep.subr.bf16.mxu0 0
  %567 = vmatpush1.bf16.msra.mxu0 %v430
  %568 = vmatprep.subr.bf16.mxu0 0
  %569 = vmatpush1.bf16.msra.mxu0 %v431
  %570 = vmatprep.subr.bf16.mxu0 0
  %571 = vmatpush1.bf16.msra.mxu0 %v432
  %572 = vmatprep.subr.bf16.mxu0 0
  %573 = vmatpush1.bf16.msra.mxu0 %v433
  %574 = vmatprep.subr.bf16.mxu0 0
  %575 = vmatpush1.bf16.msra.mxu0 %v434
  %576 = vmatprep.subr.bf16.mxu0 0
  %577 = vmatpush1.bf16.msra.mxu0 %v435
  %578 = vmatprep.subr.bf16.mxu0 0
  %579 = vmatpush1.bf16.msra.mxu0 %v436
  %580 = vmatprep.subr.bf16.mxu0 0
  %581 = vmatpush1.bf16.msra.mxu0 %v437
  %582 = vmatprep.mubr.bf16.mxu0 %v24
  %583 = vmatmul.mubr.bf16.gmra.mrb[0].mxu0 %v23
  %v584 = vpop.f32.mrb[0].mxu0
  %v585 = vadd.f32 %v164, %v584
  %v586 = vpop.f32.mrb[0].mxu0
  %v587 = vpop.f32.mrb[0].mxu0
  %v588 = vpop.f32.mrb[0].mxu0
  %589 = vdwg.mxu0
  %590 = vmatprep.subr.bf16.mxu0 0
  %591 = vmatpush1.bf16.msra.mxu0 %v438
  %592 = vmatprep.subr.bf16.mxu0 0
  %593 = vmatpush1.bf16.msra.mxu0 %v439
  %594 = vmatprep.subr.bf16.mxu0 0
  %595 = vmatpush1.bf16.msra.mxu0 %v440
  %596 = vmatprep.subr.bf16.mxu0 0
  %597 = vmatpush1.bf16.msra.mxu0 %v441
  %598 = vmatprep.subr.bf16.mxu0 0
  %599 = vmatpush1.bf16.msra.mxu0 %v442
  %600 = vmatprep.subr.bf16.mxu0 0
  %601 = vmatpush1.bf16.msra.mxu0 %v443
  %602 = vmatprep.subr.bf16.mxu0 0
  %603 = vmatpush1.bf16.msra.mxu0 %v444
  %604 = vmatprep.subr.bf16.mxu0 0
  %605 = vmatpush1.bf16.msra.mxu0 %v445
  %606 = vmatprep.subr.bf16.mxu0 0
  %607 = vmatpush1.bf16.msra.mxu0 %v446
  %608 = vmatprep.subr.bf16.mxu0 0
  %609 = vmatpush1.bf16.msra.mxu0 %v447
  %610 = vmatprep.subr.bf16.mxu0 0
  %611 = vmatpush1.bf16.msra.mxu0 %v448
  %612 = vmatprep.subr.bf16.mxu0 0
  %613 = vmatpush1.bf16.msra.mxu0 %v449
  %614 = vmatprep.subr.bf16.mxu0 0
  %615 = vmatpush1.bf16.msra.mxu0 %v450
  %616 = vmatprep.subr.bf16.mxu0 0
  %617 = vmatpush1.bf16.msra.mxu0 %v451
  %618 = vmatprep.subr.bf16.mxu0 0
  %619 = vmatpush1.bf16.msra.mxu0 %v452
  %620 = vmatprep.subr.bf16.mxu0 0
  %621 = vmatpush1.bf16.msra.mxu0 %v453
  %622 = vmatprep.mubr.bf16.mxu0 %v26
  %623 = vmatmul.mubr.bf16.gmra.mrb[0].mxu0 %v25
  %v624 = vpop.f32.mrb[0].mxu0
  %v625 = vadd.f32 %v585, %v624
  %v626 = vpop.f32.mrb[0].mxu0
  %v627 = vpop.f32.mrb[0].mxu0
  %v628 = vpop.f32.mrb[0].mxu0
  %629 = vdwg.mxu0
  %630 = vmatprep.subr.bf16.mxu0 0
  %631 = vmatpush1.bf16.msra.mxu0 %v454
  %632 = vmatprep.subr.bf16.mxu0 0
  %633 = vmatpush1.bf16.msra.mxu0 %v455
  %634 = vmatprep.subr.bf16.mxu0 0
  %635 = vmatpush1.bf16.msra.mxu0 %v456
  %636 = vmatprep.subr.bf16.mxu0 0
  %637 = vmatpush1.bf16.msra.mxu0 %v457
  %638 = vmatprep.subr.bf16.mxu0 0
  %639 = vmatpush1.bf16.msra.mxu0 %v458
  %640 = vmatprep.subr.bf16.mxu0 0
  %641 = vmatpush1.bf16.msra.mxu0 %v459
  %642 = vmatprep.subr.bf16.mxu0 0
  %643 = vmatpush1.bf16.msra.mxu0 %v460
  %644 = vmatprep.subr.bf16.mxu0 0
  %645 = vmatpush1.bf16.msra.mxu0 %v461
  %646 = vmatprep.subr.bf16.mxu0 0
  %647 = vmatpush1.bf16.msra.mxu0 %v462
  %648 = vmatprep.subr.bf16.mxu0 0
  %649 = vmatpush1.bf16.msra.mxu0 %v463
  %650 = vmatprep.subr.bf16.mxu0 0
  %651 = vmatpush1.bf16.msra.mxu0 %v464
  %652 = vmatprep.subr.bf16.mxu0 0
  %653 = vmatpush1.bf16.msra.mxu0 %v465
  %654 = vmatprep.subr.bf16.mxu0 0
  %655 = vmatpush1.bf16.msra.mxu0 %v466
  %656 = vmatprep.subr.bf16.mxu0 0
  %657 = vmatpush1.bf16.msra.mxu0 %v467
  %658 = vmatprep.subr.bf16.mxu0 0
  %659 = vmatpush1.bf16.msra.mxu0 %v468
  %660 = vmatprep.subr.bf16.mxu0 0
  %661 = vmatpush1.bf16.msra.mxu0 %v469
  %662 = vmatprep.mubr.bf16.mxu0 %v28
  %663 = vmatmul.mubr.bf16.gmra.mrb[0].mxu0 %v27
  %v664 = vpop.f32.mrb[0].mxu0
  %v665 = vadd.f32 %v625, %v664
  %v666 = vpop.f32.mrb[0].mxu0
  %v667 = vpop.f32.mrb[0].mxu0
  %v668 = vpop.f32.mrb[0].mxu0
  %669 = vdwg.mxu0
  %670 = vmatprep.subr.bf16.mxu0 0
  %671 = vmatpush1.bf16.msra.mxu0 %v470
  %672 = vmatprep.subr.bf16.mxu0 0
  %673 = vmatpush1.bf16.msra.mxu0 %v471
  %674 = vmatprep.subr.bf16.mxu0 0
  %675 = vmatpush1.bf16.msra.mxu0 %v472
  %676 = vmatprep.subr.bf16.mxu0 0
  %677 = vmatpush1.bf16.msra.mxu0 %v473
  %678 = vmatprep.subr.bf16.mxu0 0
  %679 = vmatpush1.bf16.msra.mxu0 %v474
  %680 = vmatprep.subr.bf16.mxu0 0
  %681 = vmatpush1.bf16.msra.mxu0 %v475
  %682 = vmatprep.subr.bf16.mxu0 0
  %683 = vmatpush1.bf16.msra.mxu0 %v476
  %684 = vmatprep.subr.bf16.mxu0 0
  %685 = vmatpush1.bf16.msra.mxu0 %v477
  %686 = vmatprep.subr.bf16.mxu0 0
  %687 = vmatpush1.bf16.msra.mxu0 %v478
  %688 = vmatprep.subr.bf16.mxu0 0
  %689 = vmatpush1.bf16.msra.mxu0 %v479
  %690 = vmatprep.subr.bf16.mxu0 0
  %691 = vmatpush1.bf16.msra.mxu0 %v480
  %692 = vmatprep.subr.bf16.mxu0 0
  %693 = vmatpush1.bf16.msra.mxu0 %v481
  %694 = vmatprep.subr.bf16.mxu0 0
  %695 = vmatpush1.bf16.msra.mxu0 %v482
  %696 = vmatprep.subr.bf16.mxu0 0
  %697 = vmatpush1.bf16.msra.mxu0 %v483
  %698 = vmatprep.subr.bf16.mxu0 0
  %699 = vmatpush1.bf16.msra.mxu0 %v484
  %700 = vmatprep.subr.bf16.mxu0 0
  %701 = vmatpush1.bf16.msra.mxu0 %v485
  %702 = vmatprep.mubr.bf16.mxu0 %v30
  %703 = vmatmul.mubr.bf16.gmra.mrb[0].mxu0 %v29
  %v704 = vpop.f32.mrb[0].mxu0
  %v705 = vadd.f32 %v665, %v704
  %v706 = vpop.f32.mrb[0].mxu0
  %v707 = vpop.f32.mrb[0].mxu0
  %v708 = vpop.f32.mrb[0].mxu0
  %709 = vdwg.mxu0
  %710 = vst [vmem:[%s3] sm:$0xff] %v705
  // Predicated region
  $region14: #{view_avg_aggregate.1} parent=0 // pred_check
    _
  $region15: #{view_avg_aggregate.1} parent=0 // pred_check_branch
    %712 = sbr.rel (0) target = $region17
  $region16: #{view_avg_aggregate.1} parent=0 // pred_region
    _
  $region17: #{view_avg_aggregate.1} parent=0 // pred_fallthru
    _
  // Predicated region
  $region18: #{view_avg_aggregate.1} parent=0 // pred_check
    _
  $region19: #{view_avg_aggregate.1} parent=0 // pred_check_branch
    %714 = sbr.rel (0) target = $region21
  $region20: #{view_avg_aggregate.1} parent=0 // pred_region
    _
  $region21: #{view_avg_aggregate.1} parent=0 // pred_fallthru
    _

</llo_original>
